<compile_context>
chip_gen: v7x
topology: tpu7x:2x2x1
jax: 0.10.0
libtpu: 0.0.40
codegen_flags: <defaults>
</compile_context>

<pallas_src>
import functools

import jax
import jax.numpy as jnp
from jax.experimental import pallas as pl
from jax.experimental.pallas import tpu as pltpu

N_FEATURES = 4            # polynomial library: [1, u, u^2, u^3]
LANE = 128
MAX_SAMPLE_TILE = 16384   # samples per grid step (multiple of 128)


def _round_up(x, m):
    return ((x + m - 1) // m) * m


def _library_norm_kernel(u_ref, dt_ref, theta_ref, norms_ref, ssq_ref, *, n_valid):
    """Grid: (n_outputs [parallel], n_sample_tiles [arbitrary / reduction]).

    u_ref, dt_ref : (1, 1, S_TILE)            lane-dense sample tiles of output l
    theta_ref     : (1, N_FEATURES, S_TILE)   polynomial features, stored row-wise
    norms_ref     : (1, 1, N_FEATURES)        written once, on the last sample tile
    ssq_ref       : (1, N_FEATURES) scratch   [sum dt^2, sum u^2, sum u^4, sum u^6]
    """
    j = pl.program_id(1)

    @pl.when(j == 0)
    def _init():
        ssq_ref[...] = jnp.zeros_like(ssq_ref)

    u = u_ref[0]                       # (1, S_TILE) f32
    dt = dt_ref[0]                     # (1, S_TILE) f32
    u2 = u * u
    u3 = u2 * u

    # Lane-dense, row-wise feature stores (full 128-lane vst per row).
    theta_ref[0, 0:1, :] = jnp.ones_like(u)
    theta_ref[0, 1:2, :] = u
    theta_ref[0, 2:3, :] = u2
    theta_ref[0, 3:4, :] = u3

    # Partial sums of squares (cross-lane reductions -> XLU slot).
    s_td = jnp.sum(dt * dt, axis=-1, keepdims=True)    # (1, 1)
    s_u1 = jnp.sum(u2, axis=-1, keepdims=True)
    s_u2 = jnp.sum(u2 * u2, axis=-1, keepdims=True)
    s_u3 = jnp.sum(u3 * u3, axis=-1, keepdims=True)
    ssq_ref[...] += jnp.concatenate([s_td, s_u1, s_u2, s_u3], axis=-1)   # (1, 4)

    @pl.when(j == pl.num_programs(1) - 1)
    def _finalize():
        ssq = ssq_ref[...]                                        # (1, N_FEATURES)
        # Ones column handled analytically: sum(1^2) over the VALID samples,
        # so zero-padding of the sample axis never affects the norms.
        lane = jax.lax.broadcasted_iota(jnp.int32, (1, N_FEATURES), 1)
        ssq_theta = jnp.where(lane == 0, jnp.float32(n_valid), ssq)
        # norm(dt) / norm(theta, axis=0)  ==  sqrt(ssq_td) * rsqrt(ssq_theta)
        norms_ref[0] = jnp.sqrt(ssq[:, 0:1]) * jax.lax.rsqrt(ssq_theta)


@jax.jit
def _library_fused(prediction, dt_cols):
    """prediction, dt_cols: (n_samples, n_outputs) float32.

    Returns:
      theta_t : (n_outputs, N_FEATURES, s_pad) float32
      norms   : (n_outputs, 1, N_FEATURES)     float32
    """
    n_samples, n_outputs = prediction.shape

    s_pad = _round_up(n_samples, LANE)
    if s_pad <= MAX_SAMPLE_TILE:
        s_tile = s_pad
    else:
        s_tile = MAX_SAMPLE_TILE
        s_pad = _round_up(n_samples, s_tile)

    pad = s_pad - n_samples
    pred_t = jnp.pad(prediction.astype(jnp.float32), ((0, pad), (0, 0))).T
    dt_t = jnp.pad(dt_cols.astype(jnp.float32), ((0, pad), (0, 0))).T
    pred_t = pred_t.reshape(n_outputs, 1, s_pad)
    dt_t = dt_t.reshape(n_outputs, 1, s_pad)

    grid = (n_outputs, s_pad // s_tile)
    kernel = functools.partial(_library_norm_kernel, n_valid=n_samples)

    theta_t, norms = pl.pallas_call(
        kernel,
        grid_spec=pltpu.PrefetchScalarGridSpec(
            num_scalar_prefetch=0,
            grid=grid,
            in_specs=[
                pl.BlockSpec((1, 1, s_tile), lambda l, j: (l, 0, j)),   # u
                pl.BlockSpec((1, 1, s_tile), lambda l, j: (l, 0, j)),   # dt
            ],
            out_specs=[
                pl.BlockSpec((1, N_FEATURES, s_tile), lambda l, j: (l, 0, j)),  # theta
                pl.BlockSpec((1, 1, N_FEATURES), lambda l, j: (l, 0, 0)),       # norms
            ],
            scratch_shapes=[pltpu.VMEM((1, N_FEATURES), jnp.float32)],
        ),
        out_shape=(
            jax.ShapeDtypeStruct((n_outputs, N_FEATURES, s_pad), jnp.float32),
            jax.ShapeDtypeStruct((n_outputs, 1, N_FEATURES), jnp.float32),
        ),
        compiler_params=pltpu.CompilerParams(
            dimension_semantics=("parallel", "arbitrary"),
        ),
    )(pred_t, dt_t)
    return theta_t, norms


class LibraryPallas:
    """Concrete Pallas-backed instantiation of deepymod's abstract `Library`."""

    def __init__(self):
        self.norms = None

    def library(self, inputs):
        # TODO(synk): in deepymod the time derivative comes from autograd of the
        # network prediction w.r.t. the time coordinate; `library()` is abstract
        # in the reference, so data[:, l] is treated as the precomputed du_l/dt.
        prediction, data = inputs
        n_samples, n_outputs = prediction.shape
        theta_t, norms_all = _library_fused(prediction, data[:, :n_outputs])

        thetas = [theta_t[l, :, :n_samples].T for l in range(n_outputs)]
        time_derivs = [data[:, l:l + 1] for l in range(n_outputs)]
        norms = [norms_all[l, 0] for l in range(n_outputs)]
        return time_derivs, thetas, norms

    def forward(self, inputs):
        time_derivs, thetas, norms = self.library(inputs)
        self.norms = norms            # [(n_features,) x n_outputs]
        return time_derivs, thetas


def _reference(prediction, data):
    """Pure-JAX reference matching the PyTorch semantics."""
    n_outputs = prediction.shape[1]
    time_derivs, thetas, norms = [], [], []
    for l in range(n_outputs):
        u = prediction[:, l:l + 1]
        dt = data[:, l:l + 1]
        theta = jnp.concatenate([jnp.ones_like(u), u, u * u, u * u * u], axis=1)
        time_derivs.append(dt)
        thetas.append(theta)
        norms.append(jnp.squeeze(
            jnp.linalg.norm(dt) / jnp.linalg.norm(theta, axis=0, keepdims=True)))
    return time_derivs, thetas, norms


def _check_case(key, n_samples, n_outputs, n_dims):
    k1, k2 = jax.random.split(key)
    prediction = jax.random.normal(k1, (n_samples, n_outputs), dtype=jnp.float32)
    data = jax.random.normal(k2, (n_samples, n_dims), dtype=jnp.float32)

    lib = LibraryPallas()
    time_derivs, thetas = lib.forward((prediction, data))
    jax.block_until_ready((time_derivs, thetas, lib.norms))

    ref_td, ref_th, ref_norms = _reference(prediction, data)
    for a, b in zip(time_derivs, ref_td):
        assert jnp.allclose(a, b, atol=1e-5), "time_deriv mismatch"
    for a, b in zip(thetas, ref_th):
        assert jnp.allclose(a, b, atol=1e-5), "theta mismatch"
    for a, b in zip(lib.norms, ref_norms):
        assert jnp.allclose(a, b, atol=1e-4, rtol=1e-4), "norm mismatch"


if __name__ == "__main__":
    key = jax.random.PRNGKey(0)
    k_a, k_b = jax.random.split(key)

    # Lane-aligned case.
    _check_case(k_a, n_samples=256, n_outputs=2, n_dims=2)
    # Ragged case (exercises zero-padding + analytic ones-column norm).
    _check_case(k_b, n_samples=200, n_outputs=2, n_dims=3)

    print("KERNEL_OK")
</pallas_src>

<mosaic_0001>
module attributes {stable_mosaic.version = 11 : i64} {
  func.func @_library_norm_kernel(%arg0: i32, %arg1: i32, %arg2: memref<1x1x256xf32, #tpu.memory_space<vmem>>, %arg3: memref<1x1x256xf32, #tpu.memory_space<vmem>>, %arg4: memref<1x4x256xf32, #tpu.memory_space<vmem>>, %arg5: memref<1x1x4xf32, #tpu.memory_space<vmem>>, %arg6: memref<1x4xf32, #tpu.memory_space<vmem>>) attributes {dimension_semantics = [#tpu.dimension_semantics<parallel>, #tpu.dimension_semantics<arbitrary>], iteration_bounds = array<i64: 2, 1>, scalar_prefetch = 0 : i64, scratch_operands = 1 : i64, tpu.core_type = #tpu.core_type<tc>, window_params = [{transform_indices = @transform_0, window_bounds = array<i64: 1, 1, 256>}, {transform_indices = @transform_1, window_bounds = array<i64: 1, 1, 256>}, {transform_indices = @transform_2, window_bounds = array<i64: 1, 4, 256>}, {transform_indices = @transform_3, window_bounds = array<i64: 1, 1, 4>}]} {
    %c0_i32 = arith.constant 0 : i32
    %0 = arith.cmpi eq, %arg1, %c0_i32 : i32
    %1 = arith.extui %0 : i1 to i32
    %c0_i32_0 = arith.constant 0 : i32
    %2 = arith.cmpi ne, %1, %c0_i32_0 : i32
    scf.if %2 {
      %cst_25 = arith.constant 0.000000e+00 : f32
      %40 = vector.broadcast %cst_25 : f32 to vector<1x4xf32>
      %c0_26 = arith.constant 0 : index
      %c0_27 = arith.constant 0 : index
      %41 = vector.load %arg6[%c0_26, %c0_27] : memref<1x4xf32, #tpu.memory_space<vmem>>, vector<1x4xf32>
      tpu.vector_store %arg6[%c0_26, %c0_27], %40 {strides = array<i32>} : memref<1x4xf32, #tpu.memory_space<vmem>>, vector<1x4xf32>,
    } else {
    }
    %c0 = arith.constant 0 : index
    %c0_1 = arith.constant 0 : index
    %c0_2 = arith.constant 0 : index
    %3 = vector.load %arg2[%c0, %c0_1, %c0_2] : memref<1x1x256xf32, #tpu.memory_space<vmem>>, vector<1x1x256xf32>
    %4 = vector.shape_cast %3 : vector<1x1x256xf32> to vector<1x256xf32>
    %c0_3 = arith.constant 0 : index
    %c0_4 = arith.constant 0 : index
    %c0_5 = arith.constant 0 : index
    %5 = vector.load %arg3[%c0_3, %c0_4, %c0_5] : memref<1x1x256xf32, #tpu.memory_space<vmem>>, vector<1x1x256xf32>
    %6 = vector.shape_cast %5 : vector<1x1x256xf32> to vector<1x256xf32>
    %7 = arith.mulf %4, %4 : vector<1x256xf32>
    %8 = arith.mulf %7, %4 : vector<1x256xf32>
    %cst = arith.constant 1.000000e+00 : f32
    %9 = vector.broadcast %cst : f32 to vector<1x256xf32>
    %c0_6 = arith.constant 0 : index
    %c0_7 = arith.constant 0 : index
    %c0_8 = arith.constant 0 : index
    %10 = vector.load %arg4[%c0_6, %c0_7, %c0_8] : memref<1x4x256xf32, #tpu.memory_space<vmem>>, vector<1x1x256xf32>
    %11 = vector.shape_cast %10 : vector<1x1x256xf32> to vector<1x256xf32>
    %12 = vector.shape_cast %9 : vector<1x256xf32> to vector<1x1x256xf32>
    tpu.vector_store %arg4[%c0_6, %c0_7, %c0_8], %12 {strides = array<i32>} : memref<1x4x256xf32, #tpu.memory_space<vmem>>, vector<1x1x256xf32>,
    %c0_9 = arith.constant 0 : index
    %c1 = arith.constant 1 : index
    %c0_10 = arith.constant 0 : index
    %13 = vector.load %arg4[%c0_9, %c1, %c0_10] : memref<1x4x256xf32, #tpu.memory_space<vmem>>, vector<1x1x256xf32>
    %14 = vector.shape_cast %13 : vector<1x1x256xf32> to vector<1x256xf32>
    %15 = vector.shape_cast %4 : vector<1x256xf32> to vector<1x1x256xf32>
    tpu.vector_store %arg4[%c0_9, %c1, %c0_10], %15 {strides = array<i32>} : memref<1x4x256xf32, #tpu.memory_space<vmem>>, vector<1x1x256xf32>,
    %c0_11 = arith.constant 0 : index
    %c2 = arith.constant 2 : index
    %c0_12 = arith.constant 0 : index
    %16 = vector.load %arg4[%c0_11, %c2, %c0_12] : memref<1x4x256xf32, #tpu.memory_space<vmem>>, vector<1x1x256xf32>
    %17 = vector.shape_cast %16 : vector<1x1x256xf32> to vector<1x256xf32>
    %18 = vector.shape_cast %7 : vector<1x256xf32> to vector<1x1x256xf32>
    tpu.vector_store %arg4[%c0_11, %c2, %c0_12], %18 {strides = array<i32>} : memref<1x4x256xf32, #tpu.memory_space<vmem>>, vector<1x1x256xf32>,
    %c0_13 = arith.constant 0 : index
    %c3 = arith.constant 3 : index
    %c0_14 = arith.constant 0 : index
    %19 = vector.load %arg4[%c0_13, %c3, %c0_14] : memref<1x4x256xf32, #tpu.memory_space<vmem>>, vector<1x1x256xf32>
    %20 = vector.shape_cast %19 : vector<1x1x256xf32> to vector<1x256xf32>
    %21 = vector.shape_cast %8 : vector<1x256xf32> to vector<1x1x256xf32>
    tpu.vector_store %arg4[%c0_13, %c3, %c0_14], %21 {strides = array<i32>} : memref<1x4x256xf32, #tpu.memory_space<vmem>>, vector<1x1x256xf32>,
    %22 = arith.mulf %6, %6 : vector<1x256xf32>
    %cst_15 = arith.constant dense<0.000000e+00> : vector<1xf32>
    %23 = vector.multi_reduction <add>, %22, %cst_15 [1] : vector<1x256xf32> to vector<1xf32>
    %24 = vector.shape_cast %23 : vector<1xf32> to vector<1x1xf32>
    %cst_16 = arith.constant dense<0.000000e+00> : vector<1xf32>
    %25 = vector.multi_reduction <add>, %7, %cst_16 [1] : vector<1x256xf32> to vector<1xf32>
    %26 = vector.shape_cast %25 : vector<1xf32> to vector<1x1xf32>
    %27 = arith.mulf %7, %7 : vector<1x256xf32>
    %cst_17 = arith.constant dense<0.000000e+00> : vector<1xf32>
    %28 = vector.multi_reduction <add>, %27, %cst_17 [1] : vector<1x256xf32> to vector<1xf32>
    %29 = vector.shape_cast %28 : vector<1xf32> to vector<1x1xf32>
    %30 = arith.mulf %8, %8 : vector<1x256xf32>
    %cst_18 = arith.constant dense<0.000000e+00> : vector<1xf32>
    %31 = vector.multi_reduction <add>, %30, %cst_18 [1] : vector<1x256xf32> to vector<1xf32>
    %32 = vector.shape_cast %31 : vector<1xf32> to vector<1x1xf32>
    %c0_19 = arith.constant 0 : index
    %c0_20 = arith.constant 0 : index
    %33 = vector.load %arg6[%c0_19, %c0_20] : memref<1x4xf32, #tpu.memory_space<vmem>>, vector<1x4xf32>
    %34 = tpu.concatenate %24, %26, %29, %32 in 1 : vector<1x1xf32>, vector<1x1xf32>, vector<1x1xf32>, vector<1x1xf32> -> vector<1x4xf32>
    %35 = arith.addf %33, %34 : vector<1x4xf32>
    %c0_21 = arith.constant 0 : index
    %c0_22 = arith.constant 0 : index
    %36 = vector.load %arg6[%c0_21, %c0_22] : memref<1x4xf32, #tpu.memory_space<vmem>>, vector<1x4xf32>
    tpu.vector_store %arg6[%c0_21, %c0_22], %35 {strides = array<i32>} : memref<1x4xf32, #tpu.memory_space<vmem>>, vector<1x4xf32>,
    %c0_i32_23 = arith.constant 0 : i32
    %37 = arith.cmpi eq, %arg1, %c0_i32_23 : i32
    %38 = arith.extui %37 : i1 to i32
    %c0_i32_24 = arith.constant 0 : i32
    %39 = arith.cmpi ne, %38, %c0_i32_24 : i32
    scf.if %39 {
      %c0_25 = arith.constant 0 : index
      %c0_26 = arith.constant 0 : index
      %40 = vector.load %arg6[%c0_25, %c0_26] : memref<1x4xf32, #tpu.memory_space<vmem>>, vector<1x4xf32>
      %41 = tpu.iota {dimensions = array<i32: 1>} : vector<1x4xi32>
      %c0_i32_27 = arith.constant 0 : i32
      %42 = vector.broadcast %c0_i32_27 : i32 to vector<1x4xi32>
      %43 = arith.cmpi eq, %41, %42 : vector<1x4xi32>
      %cst_28 = arith.constant 2.560000e+02 : f32
      %44 = vector.broadcast %cst_28 : f32 to vector<1x4xf32>
      %45 = arith.select %43, %44, %40 : vector<1x4xi1>, vector<1x4xf32>
      %46 = vector.extract_strided_slice %40 {offsets = [0, 0], sizes = [1, 1], strides = [1, 1]} : vector<1x4xf32> to vector<1x1xf32>
      %47 = math.sqrt %46 : vector<1x1xf32>
      %48 = math.rsqrt %45 : vector<1x4xf32>
      %49 = vector.broadcast %47 : vector<1x1xf32> to vector<1x4xf32>
      %50 = arith.mulf %49, %48 : vector<1x4xf32>
      %c0_29 = arith.constant 0 : index
      %c0_30 = arith.constant 0 : index
      %c0_31 = arith.constant 0 : index
      %51 = vector.load %arg5[%c0_29, %c0_30, %c0_31] : memref<1x1x4xf32, #tpu.memory_space<vmem>>, vector<1x1x4xf32>
      %52 = vector.shape_cast %51 : vector<1x1x4xf32> to vector<1x4xf32>
      %53 = vector.shape_cast %50 : vector<1x4xf32> to vector<1x1x4xf32>
      tpu.vector_store %arg5[%c0_29, %c0_30, %c0_31], %53 {strides = array<i32>} : memref<1x1x4xf32, #tpu.memory_space<vmem>>, vector<1x1x4xf32>,
    } else {
    }
    return
  }
  func.func @transform_0(%arg0: i32, %arg1: i32) -> (i32, i32, i32) {
    %c0_i32 = arith.constant 0 : i32
    %c0_i32_0 = arith.constant 0 : i32
    return %arg0, %c0_i32, %arg1 : i32, i32, i32
  }
  func.func @transform_1(%arg0: i32, %arg1: i32) -> (i32, i32, i32) {
    %c0_i32 = arith.constant 0 : i32
    %c0_i32_0 = arith.constant 0 : i32
    return %arg0, %c0_i32, %arg1 : i32, i32, i32
  }
  func.func @transform_2(%arg0: i32, %arg1: i32) -> (i32, i32, i32) {
    %c0_i32 = arith.constant 0 : i32
    %c0_i32_0 = arith.constant 0 : i32
    return %arg0, %c0_i32, %arg1 : i32, i32, i32
  }
  func.func @transform_3(%arg0: i32, %arg1: i32) -> (i32, i32, i32) {
    %c0_i32 = arith.constant 0 : i32
    %c0_i32_0 = arith.constant 0 : i32
    %c0_i32_1 = arith.constant 0 : i32
    return %arg0, %c0_i32, %c0_i32_0 : i32, i32, i32
  }
}

</mosaic_0001>

<llo_original>
// kernel: _library_fused.1
$region0: #{_library_fused.1}
  #allocation0 [shape = 'u32[]', space=smem, size = 0x4, offset = 0x4, fixed_abs, tag = 'smem constant byte address 0x4 - core index']
  #allocation1 [shape = 'u32[144,128]{1,0:T(1,128)}', space=vmem, size = 0x12000, scoped, tag = 'internal scratch']
  #allocation2 [shape = 'f32[1,4]{1,0:T(1,128)}', space=vmem, size = 0x200, scoped, tag = 'scratch operand']
  %s0 = inlined_call_operand.vmem [shape: f32[2,1,256], index: 0, kind: input, shape index: {}]
  %s1 = inlined_call_operand.vmem [shape: f32[2,1,256], index: 1, kind: input, shape index: {}]
  %s2 = inlined_call_operand.hbm [shape: f32[2,4,256], index: 2, kind: output, shape index: {0}]
  %s3 = inlined_call_operand.hbm [shape: f32[2,1,4], index: 3, kind: output, shape index: {1}]
  %4 = xla_tuple %s2, %s3
  %s5 = sld [smem:[#allocation0]]
  $region57: #{_library_fused.1} parent=0
    _
  %s7 = ssub.s32 1, %s5
  %s8 = scalar_select 0, %s7, %s5
  $region1: #{_library_fused.1} parent=0
    #allocation3 [shape = 'u8[8192]{0}', space=vmem, size = 0x2000, scoped, tag = 'output window, operand 0']
    #allocation4 [shape = 's32[2]{0}', space=sflag, size = 0x8, scoped, tag = 'scoped memory for _library_fused.1']
    #allocation5 [shape = 'u8[1024]{0}', space=vmem, size = 0x400, scoped, tag = 'output window, operand 1']
    #allocation6 [shape = 's32[2]{0}', space=sflag, size = 0x8, scoped, tag = 'scoped memory for _library_fused.1']
    %9 = vsyncpa [#allocation4], 0
    %s10 = scalar_lea.sflag [#allocation4], 1
    %11 = vsyncpa %s10, 0
    %12 = vsyncpa [#allocation6], 0
    %s13 = scalar_lea.sflag [#allocation6], 1
    %14 = vsyncpa %s13, 0
    loop: start=0, step=1, limit=4
    $region2: #{_library_fused.1} parent=1 // loop_pre_header
      _
    $region3: #{_library_fused.1} parent=1 // loop_header
      %s16 = sphi 0, %s20
      %p17 = scmp.ge.s32.totalorder %s16, 4
      %s23 = sphi 0, %s35
      %s24 = sphi 0, %s31
      %s25 = sphi 0, %s23
      %s26 = sphi 0, %s24
      %s27 = sphi 0, %s25
      %s28 = sphi 0, %s26
      %s40 = sphi 0, %s42
      %s43 = sphi 0, %s40
      %s44 = sphi 0, %s43
      %s60 = sphi 0, %s44
      %s68 = sphi 0, %s70
      %s71 = sphi 0, %s68
      %s72 = sphi 0, %s71
      %s88 = sphi 0, %s72
      %s96 = sphi 0, %s98
      %s99 = sphi 0, %s96
      %s100 = sphi 0, %s99
      %s116 = sphi 0, %s100
      %s122 = sphi 0, %s124
      %s125 = sphi 0, %s122
      %s126 = sphi 0, %s125
      %s142 = sphi 0, %s126
    $region4: #{_library_fused.1} parent=1 // loop_header_branch
      %19 = sbr.rel (%p17) target = $region8
    $region5: #{_library_fused.1} parent=1 // loop_body
      %s21 = ssub.s32 %s16, 1
      %s22 = ssub.s32 %s16, 2
      %s29 = sadd.s32 1, %s24
      %p30 = scmp.ge.s32.totalorder %s29, 1
      %s31 = scalar_select %p30, 0, %s29
      %s32 = sadd.s32 1, %s23
      %s33 = scalar_select %p30, %s32, %s23
      %p34 = scmp.ge.s32.totalorder %s33, 2
      %s35 = scalar_select %p34, 0, %s33
      %s36 = ssub.s32 %s23, %s35
      %s37 = ssub.s32 %s24, %s31
      %s38 = sor.u32 %s36, %s37
      %p39 = scmp.eq.s32.totalorder %s38, 0
      %s41 = sadd.s32 %s40, 1
      %s42 = scalar_select %p39, %s40, %s41
      %p45 = pneg %p39
      %p46 = scmp.eq.s32.totalorder %s16, 1
      %p47 = por %p45, %p46
      %p48 = scmp.ne.s32.totalorder %s40, %s43
      %p49 = scmp.eq.s32.totalorder %s16, 0
      %p50 = por %p48, %p49
      %p51 = scmp.ne.s32.totalorder %s40, %s43
      %p52 = scmp.eq.s32.totalorder %s21, 1
      %p53 = por %p51, %p52
      %p54 = scmp.ne.s32.totalorder %s43, %s44
      %p55 = scmp.eq.s32.totalorder %s21, 0
      %p56 = por %p54, %p55
      %p57 = scmp.ne.s32.totalorder %s43, %s44
      %p58 = scmp.eq.s32.totalorder %s22, 1
      %p59 = por %p57, %p58
      %p61 = scmp.ne.s32.totalorder %s44, %s60
      %p62 = scmp.eq.s32.totalorder %s22, 0
      %p63 = por %p61, %p62
      %s64 = ssub.s32 %s23, %s35
      %s65 = ssub.s32 %s24, %s31
      %s66 = sor.u32 %s64, %s65
      %p67 = scmp.eq.s32.totalorder %s66, 0
      %s69 = sadd.s32 %s68, 1
      %s70 = scalar_select %p67, %s68, %s69
      %p73 = pneg %p67
      %p74 = scmp.eq.s32.totalorder %s16, 1
      %p75 = por %p73, %p74
      %p76 = scmp.ne.s32.totalorder %s68, %s71
      %p77 = scmp.eq.s32.totalorder %s16, 0
      %p78 = por %p76, %p77
      %p79 = scmp.ne.s32.totalorder %s68, %s71
      %p80 = scmp.eq.s32.totalorder %s21, 1
      %p81 = por %p79, %p80
      %p82 = scmp.ne.s32.totalorder %s71, %s72
      %p83 = scmp.eq.s32.totalorder %s21, 0
      %p84 = por %p82, %p83
      %p85 = scmp.ne.s32.totalorder %s71, %s72
      %p86 = scmp.eq.s32.totalorder %s22, 1
      %p87 = por %p85, %p86
      %p89 = scmp.ne.s32.totalorder %s72, %s88
      %p90 = scmp.eq.s32.totalorder %s22, 0
      %p91 = por %p89, %p90
      %s92 = ssub.s32 %s23, %s35
      %s93 = ssub.s32 %s24, %s31
      %s94 = sor.u32 %s92, %s93
      %p95 = scmp.eq.s32.totalorder %s94, 0
      %s97 = sadd.s32 %s96, 1
      %s98 = scalar_select %p95, %s96, %s97
      %p101 = pneg %p95
      %p102 = scmp.eq.s32.totalorder %s16, 1
      %p103 = por %p101, %p102
      %p104 = scmp.ne.s32.totalorder %s96, %s99
      %p105 = scmp.eq.s32.totalorder %s16, 0
      %p106 = por %p104, %p105
      %p107 = scmp.ne.s32.totalorder %s96, %s99
      %p108 = scmp.eq.s32.totalorder %s21, 1
      %p109 = por %p107, %p108
      %p110 = scmp.ne.s32.totalorder %s99, %s100
      %p111 = scmp.eq.s32.totalorder %s21, 0
      %p112 = por %p110, %p111
      %p113 = scmp.ne.s32.totalorder %s99, %s100
      %p114 = scmp.eq.s32.totalorder %s22, 1
      %p115 = por %p113, %p114
      %p117 = scmp.ne.s32.totalorder %s100, %s116
      %p118 = scmp.eq.s32.totalorder %s22, 0
      %p119 = por %p117, %p118
      %s120 = ssub.s32 %s23, %s35
      %p121 = scmp.eq.s32.totalorder %s120, 0
      %s123 = sadd.s32 %s122, 1
      %s124 = scalar_select %p121, %s122, %s123
      %p127 = pneg %p121
      %p128 = scmp.eq.s32.totalorder %s16, 1
      %p129 = por %p127, %p128
      %p130 = scmp.ne.s32.totalorder %s122, %s125
      %p131 = scmp.eq.s32.totalorder %s16, 0
      %p132 = por %p130, %p131
      %p133 = scmp.ne.s32.totalorder %s122, %s125
      %p134 = scmp.eq.s32.totalorder %s21, 1
      %p135 = por %p133, %p134
      %p136 = scmp.ne.s32.totalorder %s125, %s126
      %p137 = scmp.eq.s32.totalorder %s21, 0
      %p138 = por %p136, %p137
      %p139 = scmp.ne.s32.totalorder %s125, %s126
      %p140 = scmp.eq.s32.totalorder %s22, 1
      %p141 = por %p139, %p140
      %p143 = scmp.ne.s32.totalorder %s126, %s142
      %p144 = scmp.eq.s32.totalorder %s22, 0
      %p145 = por %p143, %p144
      %p146 = scmp.le.s32.totalorder 1, %s16
      %p147 = scmp.lt.s32.totalorder %s16, 3
      %p148 = pnand %p146, %p147
      %p149 = pneg %p148
      // Predicated region
      $region9: #{_library_fused.1} parent=5 // pred_check
        _
      $region10: #{_library_fused.1} parent=5 // pred_check_branch
        %151 = sbr.rel (%p148) target = $region12
      $region11: #{_library_fused.1} parent=5 // pred_region
        %s152 = ssub.s32 %s16, 1
      $region12: #{_library_fused.1} parent=5 // pred_fallthru
        _
      %p153 = scmp.lt.s32.totalorder %s16, 2
      // Predicated region
      $region13: #{_library_fused.1} parent=5 // pred_check
        %p154 = pneg %p153
      $region14: #{_library_fused.1} parent=5 // pred_check_branch
        %156 = sbr.rel (%p154) target = $region16
      $region15: #{_library_fused.1} parent=5 // pred_region
        // Predicated region
        $region17: #{_library_fused.1} parent=15 // pred_check
          %p157 = pneg %p50
        $region18: #{_library_fused.1} parent=15 // pred_check_branch
          %159 = sbr.rel (%p157) target = $region20
        $region19: #{_library_fused.1} parent=15 // pred_region
          %s160 = smul.u32 2, %s24
          %p161 = scmp.lt.s32.totalorder %s23, 1
          %s162 = scalar_select %p161, %s23, 1
          %p163 = scmp.lt.s32.totalorder %s160, 1
          %s164 = scalar_select %p163, %s160, 1
          %s165 = smul.addr %s162, 2
          %s166 = sadd.s32 %s164, %s165
          %s167 = scalar_lea.vmem %s0, %s166
          %s168 = smul.u32 2, %s24
        $region20: #{_library_fused.1} parent=15 // pred_fallthru
          _
        // Predicated region
        $region21: #{_library_fused.1} parent=15 // pred_check
          %p169 = pneg %p78
        $region22: #{_library_fused.1} parent=15 // pred_check_branch
          %171 = sbr.rel (%p169) target = $region24
        $region23: #{_library_fused.1} parent=15 // pred_region
          %s172 = smul.u32 2, %s24
          %p173 = scmp.lt.s32.totalorder %s23, 1
          %s174 = scalar_select %p173, %s23, 1
          %p175 = scmp.lt.s32.totalorder %s172, 1
          %s176 = scalar_select %p175, %s172, 1
          %s177 = smul.addr %s174, 2
          %s178 = sadd.s32 %s176, %s177
          %s179 = scalar_lea.vmem %s1, %s178
          %s180 = smul.u32 2, %s24
        $region24: #{_library_fused.1} parent=15 // pred_fallthru
          _
      $region16: #{_library_fused.1} parent=5 // pred_fallthru
        _
      %p181 = scmp.le.s32.totalorder 1, %s16
      %p182 = scmp.lt.s32.totalorder %s16, 3
      %p183 = pnand %p181, %p182
      %p184 = pneg %p183
      // Predicated region
      $region25: #{_library_fused.1} parent=5 // pred_check
        _
      $region26: #{_library_fused.1} parent=5 // pred_check_branch
        %186 = sbr.rel (%p183) target = $region28
      $region27: #{_library_fused.1} parent=5 // pred_region
        %s187 = ssub.s32 %s16, 1
        %s188 = smul.u32 2, %s26
        %p189 = scmp.lt.s32.totalorder %s25, 1
        %s190 = scalar_select %p189, %s25, 1
        %p191 = scmp.lt.s32.totalorder %s188, 1
        %s192 = scalar_select %p191, %s188, 1
        %s193 = smul.addr %s190, 2
        %s194 = sadd.s32 %s192, %s193
        %s195 = scalar_lea.vmem %s0, %s194
        %p196 = pneg %p56
        %p197 = pneg %p53
        %s198 = smul.u32 2, %s26
        %p199 = scmp.lt.s32.totalorder %s25, 1
        %s200 = scalar_select %p199, %s25, 1
        %p201 = scmp.lt.s32.totalorder %s198, 1
        %s202 = scalar_select %p201, %s198, 1
        %s203 = smul.addr %s200, 2
        %s204 = sadd.s32 %s202, %s203
        %s205 = scalar_lea.vmem %s1, %s204
        %p206 = pneg %p84
        %p207 = pneg %p81
        %p208 = pneg %p112
        %p209 = pneg %p109
        %s210 = sand.u32 %s99, 1
        %s211 = scalar_lea.sflag [#allocation4], %s210
        %s212 = sand.u32 %s99, 1
        %s213 = smul.addr %s212, 8
        %s214 = scalar_lea.vmem [#allocation3], %s213
        %p215 = pneg %p138
        %p216 = pneg %p135
        %s217 = sand.u32 %s125, 1
        %s218 = scalar_lea.sflag [#allocation6], %s217
        %s219 = sand.u32 %s125, 1
        %s220 = scalar_lea.vmem [#allocation5], %s219
        %s221 = smul.u32 2, %s26
        %p222 = scmp.lt.s32.totalorder %s25, 1
        %s223 = scalar_select %p222, %s25, 1
        %p224 = scmp.lt.s32.totalorder %s221, 1
        %s225 = scalar_select %p224, %s221, 1
        %s226 = smul.addr %s223, 2
        %s227 = sadd.s32 %s225, %s226
        %s228 = scalar_lea.vmem %s0, %s227
        %s229 = smul.u32 2, %s26
        %s230 = smul.u32 2, %s26
        %p231 = scmp.lt.s32.totalorder %s25, 1
        %s232 = scalar_select %p231, %s25, 1
        %p233 = scmp.lt.s32.totalorder %s230, 1
        %s234 = scalar_select %p233, %s230, 1
        %s235 = smul.addr %s232, 2
        %s236 = sadd.s32 %s234, %s235
        %s237 = scalar_lea.vmem %s1, %s236
        %s238 = smul.u32 2, %s26
        %s239 = smul.u32 2, %s26
        %p240 = scmp.eq.s32.totalorder %s26, 0
        // Predicated region
        $region29: #{_library_fused.1} parent=27 // pred_check
          %p241 = pneg %p240
        $region30: #{_library_fused.1} parent=27 // pred_check_branch
          %243 = sbr.rel (%p241) target = $region32
        $region31: #{_library_fused.1} parent=27 // pred_region
          %vm244 = vcmask 24576
          %245 = vst.msk [vmem:[#allocation2] sm:$0x1] %vm244, 0.0
        $region32: #{_library_fused.1} parent=27 // pred_fallthru
          _
        %v246 = vld [vmem:[%s228] sm:$0x3]
        %v247 = vld [vmem:[%s237] sm:$0x3]
        %v248 = vmul.f32 %v246, %v246
        %v249 = vmul.f32 %v248, %v246
        %v250 = vlaneseq
        %vm251 = vcmp.ge.s32.totalorder %v250, 0
        %vm252 = vcmp.lt.s32.totalorder %v250, 256
        %vm253 = vmand %vm251, %vm252
        %254 = vst.msk [vmem:[%s214] ss:$4 sm:$0x3] %vm253, 1.0
        %s255 = scalar_lea.vmem %s214, 1 [#allocation3]
        %256 = vst.msk [vmem:[%s255] ss:$4 sm:$0x3] %vm253, %v246
        %s257 = scalar_lea.vmem %s214, 2 [#allocation3]
        %258 = vst.msk [vmem:[%s257] ss:$4 sm:$0x3] %vm253, %v248
        %s259 = scalar_lea.vmem %s214, 3 [#allocation3]
        %260 = vst.msk [vmem:[%s259] ss:$4 sm:$0x3] %vm253, %v249
        %v261 = vmul.f32 %v247, %v247
        %v263 = vlaneseq
        %v264 = vshrl.u32 %v263, 7
        %v265 = vsub.s32 0, %v264
        %v266 = vrot.slane %v261, %v265
        %v267 = vlaneseq
        %v268 = vshrl.u32 %v267, 7
        %v269 = vsub.s32 1, %v268
        %v270 = vrot.slane %v261, %v269
        %vm273 = vcmask 1040384
        %v274 = vsel %vm273, %v266, 0.0
        %v275 = vsel %vm273, %v270, 0.0
        %v276 = vadd.f32 %v274, %v275
        %277 = vadd.xlane.f32.xlu0 %v276
        %v278 = vpop.xlane.xlu0 %277
        %v280 = vlaneseq
        %v281 = vshrl.u32 %v280, 7
        %v282 = vsub.s32 0, %v281
        %v283 = vrot.slane %v248, %v282
        %v284 = vlaneseq
        %v285 = vshrl.u32 %v284, 7
        %v286 = vsub.s32 1, %v285
        %v287 = vrot.slane %v248, %v286
        %v290 = vsel %vm273, %v283, 0.0
        %v291 = vsel %vm273, %v287, 0.0
        %v292 = vadd.f32 %v290, %v291
        %293 = vadd.xlane.f32.xlu0 %v292
        %v294 = vpop.xlane.xlu0 %293
        %v295 = vmul.f32 %v248, %v248
        %v297 = vlaneseq
        %v298 = vshrl.u32 %v297, 7
        %v299 = vsub.s32 0, %v298
        %v300 = vrot.slane %v295, %v299
        %v301 = vlaneseq
        %v302 = vshrl.u32 %v301, 7
        %v303 = vsub.s32 1, %v302
        %v304 = vrot.slane %v295, %v303
        %v307 = vsel %vm273, %v300, 0.0
        %v308 = vsel %vm273, %v304, 0.0
        %v309 = vadd.f32 %v307, %v308
        %310 = vadd.xlane.f32.xlu0 %v309
        %v311 = vpop.xlane.xlu0 %310
        %v312 = vmul.f32 %v249, %v249
        %v314 = vlaneseq
        %v315 = vshrl.u32 %v314, 7
        %v316 = vsub.s32 0, %v315
        %v317 = vrot.slane %v312, %v316
        %v318 = vlaneseq
        %v319 = vshrl.u32 %v318, 7
        %v320 = vsub.s32 1, %v319
        %v321 = vrot.slane %v312, %v320
        %v324 = vsel %vm273, %v317, 0.0
        %v325 = vsel %vm273, %v321, 0.0
        %v326 = vadd.f32 %v324, %v325
        %327 = vadd.xlane.f32.xlu0 %v326
        %v328 = vpop.xlane.xlu0 %327
        %v329 = vld [vmem:[#allocation2] sm:$0x1]
        %vm330 = vcmask 7168
        %v331 = vsel %vm330, %v278, %v294
        %vm332 = vcmask 15360
        %v333 = vsel %vm332, %v331, %v311
        %vm334 = vcmask 23552
        %v335 = vsel %vm334, %v333, %v328
        %v336 = vadd.f32 %v329, %v335
        %vm337 = vcmask 24576
        %338 = vst.msk [vmem:[#allocation2] sm:$0x1] %vm337, %v336
        // Predicated region
        $region33: #{_library_fused.1} parent=27 // pred_check
          %p339 = pneg %p240
        $region34: #{_library_fused.1} parent=27 // pred_check_branch
          %341 = sbr.rel (%p339) target = $region36
        $region35: #{_library_fused.1} parent=27 // pred_region
          %v342 = vld [vmem:[#allocation2] sm:$0x1]
          %v343 = vlaneseq
          %v344 = vand.u32 %v343, 127
          %vm345 = vcmp.eq.s32.totalorder %v344, 0
          %v346 = vsel %vm345, 256.0, %v342
          %v347 = vrsqrt.pop %v342
          %v348 = vmul.f32 %v342, %v347
          %vm349 = vcmp.eq.f32.partialorder %v342, inf
          %v350 = vsel %vm349, %v342, %v348
          %vm351 = vcmp.eq.f32.partialorder %v342, 0.0
          %v352 = vand.u32 %v342, 2147483648
          %v353 = vsel %vm351, %v352, %v350
          %v354 = vrsqrt.pop %v346
          %356 = vset.pattern.permute.xlu0 0
          %357 = vperm.xlu0 %356, %v353
          %v358 = vpop.permute.xlu0 %357
          %v360 = vlaneseq
          %v361 = vshrl.u32 %v360, 7
          %v362 = vsub.s32 0, %v361
          %v363 = vrot.slane %v358, %v362
          %v364 = vmul.f32 %v363, %v354
          %365 = vst.msk [vmem:[%s220] sm:$0x1] %vm337, %v364
        $region36: #{_library_fused.1} parent=27 // pred_fallthru
          _
        %s366 = sand.u32 %s99, 1
        %s367 = scalar_lea.sflag [#allocation4], %s366
        %s368 = sand.u32 %s99, 1
        %s369 = smul.addr %s368, 8
        %s370 = scalar_lea.vmem [#allocation3], %s369
        %s371 = sand.u32 %s125, 1
        %s372 = scalar_lea.sflag [#allocation6], %s371
        %s373 = sand.u32 %s125, 1
        %s374 = scalar_lea.vmem [#allocation5], %s373
        // Predicated region
        $region37: #{_library_fused.1} parent=27 // pred_check
          %p375 = pneg %p109
        $region38: #{_library_fused.1} parent=27 // pred_check_branch
          %377 = sbr.rel (%p375) target = $region40
        $region39: #{_library_fused.1} parent=27 // pred_region
          %s378 = smul.u32 2, %s26
          %s380 = ssub.s32 128, 128
          %381 = vsyncadd %s367, %s380
          %s382 = smul.addr %s25, 2
          %s383 = sadd.s32 %s378, %s382
          %s384 = smul.addr %s383, 64
          %s385 = scalar_lea.hbm %s2, %s384
          %s387 = sshll.u32 %s370, 4
          %s388 = int_to_ptr.vmem [resolvable:$true] %s387
          %390 = dma.vmem_to_hbm [thread:$0]  %s388, 128, %s385, %s367
        $region40: #{_library_fused.1} parent=27 // pred_fallthru
          _
        // Predicated region
        $region41: #{_library_fused.1} parent=27 // pred_check
          %p391 = pneg %p135
        $region42: #{_library_fused.1} parent=27 // pred_check_branch
          %393 = sbr.rel (%p391) target = $region44
        $region43: #{_library_fused.1} parent=27 // pred_region
          %s395 = ssub.s32 16, 16
          %396 = vsyncadd %s372, %s395
          %s397 = smul.addr %s25, 16
          %s398 = scalar_lea.hbm %s3, %s397
          %s400 = sshll.u32 %s374, 4
          %s401 = int_to_ptr.vmem [resolvable:$true] %s400
          %403 = dma.vmem_to_hbm [thread:$0]  %s401, 16, %s398, %s372
        $region44: #{_library_fused.1} parent=27 // pred_fallthru
          _
      $region28: #{_library_fused.1} parent=5 // pred_fallthru
        _
      %p404 = scmp.le.s32.totalorder 2, %s16
      // Predicated region
      $region45: #{_library_fused.1} parent=5 // pred_check
        %p405 = pneg %p404
      $region46: #{_library_fused.1} parent=5 // pred_check_branch
        %407 = sbr.rel (%p405) target = $region48
      $region47: #{_library_fused.1} parent=5 // pred_region
        %s408 = ssub.s32 %s16, 2
        // Predicated region
        $region49: #{_library_fused.1} parent=47 // pred_check
          %p409 = pneg %p115
        $region50: #{_library_fused.1} parent=47 // pred_check_branch
          %411 = sbr.rel (%p409) target = $region52
        $region51: #{_library_fused.1} parent=47 // pred_region
          %s412 = sand.u32 %s100, 1
          %s413 = scalar_lea.sflag [#allocation4], %s412
          %s414 = sand.u32 %s100, 1
          %s415 = smul.addr %s414, 8
          %s416 = scalar_lea.vmem [#allocation3], %s415
          %417 = dma.done %s413, 128
        $region52: #{_library_fused.1} parent=47 // pred_fallthru
          _
        // Predicated region
        $region53: #{_library_fused.1} parent=47 // pred_check
          %p418 = pneg %p141
        $region54: #{_library_fused.1} parent=47 // pred_check_branch
          %420 = sbr.rel (%p418) target = $region56
        $region55: #{_library_fused.1} parent=47 // pred_region
          %s421 = sand.u32 %s126, 1
          %s422 = scalar_lea.sflag [#allocation6], %s421
          %s423 = sand.u32 %s126, 1
          %s424 = scalar_lea.vmem [#allocation5], %s423
          %425 = dma.done %s422, 16
        $region56: #{_library_fused.1} parent=47 // pred_fallthru
          _
      $region48: #{_library_fused.1} parent=5 // pred_fallthru
        _
    $region6: #{_library_fused.1} parent=1 // loop_footer
      %s20 = sadd.s32 1, %s16
    $region7: #{_library_fused.1} parent=1 // loop_footer_branch
      %15 = sbr.rel target = $region3
    $region8: #{_library_fused.1} parent=1 // loop_exit
      _
    %426 = vsyncpa [#allocation4], 1
    %s427 = scalar_lea.sflag [#allocation4], 1
    %428 = vsyncpa %s427, 1
    %429 = vsyncpa [#allocation6], 1
    %s430 = scalar_lea.sflag [#allocation6], 1
    %431 = vsyncpa %s430, 1

</llo_original>
